<compile_context>
chip_gen: v7x
topology: tpu7x:2x2x1
jax: 0.10.0
libtpu: 0.0.40
codegen_flags: <defaults>
</compile_context>

<pallas_src>
import functools

import jax
import jax.numpy as jnp
from jax.experimental import pallas as pl
from jax.experimental.pallas import tpu as pltpu

LANES = 128
SUBLANES = 8
# Gridless fast-path threshold (rows of 128 lanes). Kept independent of the
# tiled tile_rows so growing tiles never pushes medium problems onto the
# non-pipelined (serial DMA -> compute) path.
_SINGLE_BLOCK_MAX_ROWS = 2048


def _weighted_sq_err(x, t, epsilon, fg_weight):
    x = x.astype(jnp.float32)
    t = t.astype(jnp.float32)
    w1 = jnp.where(t > epsilon, fg_weight, 1.0)
    w2 = jnp.where(x > epsilon, fg_weight, 1.0)
    d = x - t
    return w1 * w2 * d * d


def _wmse_single_kernel(x_ref, t_ref, out_ref, *, epsilon, fg_weight):
    # Whole slab in one block: compute, reduce once, write one lane row (sum).
    wse = _weighted_sq_err(x_ref[...], t_ref[...], epsilon, fg_weight)
    out_ref[...] = jnp.full((1, LANES), jnp.sum(wse), dtype=jnp.float32)


def _wmse_tiled_kernel(x_ref, t_ref, out_ref, acc_ref, *, epsilon, fg_weight,
                       tile_rows, steps, valid_rows, need_mask):
    i = pl.program_id(1)

    @pl.when(i == 0)
    def _():
        acc_ref[...] = jnp.zeros_like(acc_ref)

    wse = _weighted_sq_err(x_ref[...], t_ref[...], epsilon, fg_weight)

    if need_mask:
        # Mask BEFORE the reduction: zeros the garbage rows of the (single)
        # partial edge block and the whole of any clamped/duplicated overrun
        # block (their unclamped block_idx * tile_rows >= valid_rows).
        block_idx = pl.program_id(0) * steps + i  # unclamped on purpose
        row = block_idx * tile_rows + jax.lax.broadcasted_iota(
            jnp.int32, wse.shape, 0)
        wse = jnp.where(row < valid_rows, wse, 0.0)

    # Vreg-sized accumulation: fold (tile_rows, 128) down to one (8, 128)
    # vreg with a pure-VALU sublane-aligned reshape-sum (hidden under the
    # input DMA) instead of streaming a full-tile accumulator through VMEM.
    acc_ref[...] += wse.reshape(-1, SUBLANES, LANES).sum(axis=0)

    @pl.when(i == steps - 1)
    def _():
        # Single cross-lane/sublane reduction, once per core split.
        out_ref[...] = jnp.full((1, SUBLANES, LANES), jnp.sum(acc_ref[...]),
                                dtype=jnp.float32)


def weighted_mse_loss(inp, target, epsilon=1e-3, foreground_weight=10.0,
                      tile_rows=4096, num_core_splits=2):
    """Pallas TPU implementation of WeightedMSELoss.forward."""
    assert inp.shape == target.shape
    assert tile_rows % SUBLANES == 0
    n = inp.size
    epsilon = float(epsilon)
    fg_weight = float(foreground_weight)

    # Keep native dtype end-to-end (kernel casts to f32 after the VMEM load).
    x_flat = inp.reshape(-1)
    t_flat = target.reshape(-1)

    rows = n // LANES          # full 128-lane rows
    n_main = rows * LANES
    tail = n - n_main          # < 128 leftover elements

    total = jnp.float32(0.0)

    if tail:
        # < 128 leftover elements: fold them in plain JAX instead of padding
        # (the old jnp.pad re-materialized both full N-element tensors).
        total = total + jnp.sum(
            _weighted_sq_err(x_flat[n_main:], t_flat[n_main:],
                             epsilon, fg_weight))

    if rows > 0:
        x2d = (x_flat[:n_main] if tail else x_flat).reshape(rows, LANES)
        t2d = (t_flat[:n_main] if tail else t_flat).reshape(rows, LANES)

        if rows <= _SINGLE_BLOCK_MAX_ROWS:
            kernel = functools.partial(_wmse_single_kernel, epsilon=epsilon,
                                       fg_weight=fg_weight)
            out = pl.pallas_call(
                kernel,
                out_shape=jax.ShapeDtypeStruct((1, LANES), jnp.float32),
            )(x2d, t2d)
            total = total + out[0, 0]
        else:
            # Never request a block taller than the slab; keep it sublane
            # aligned so the in-kernel reshape-sum stays layout-free.
            tile_rows_eff = min(tile_rows, (rows // SUBLANES) * SUBLANES)
            total_blocks = pl.cdiv(rows, tile_rows_eff)
            splits = max(1, min(int(num_core_splits), total_blocks))
            steps = pl.cdiv(total_blocks, splits)
            # Any rounding (partial edge block or duplicated overrun blocks)
            # is neutralized by the in-kernel row mask.
            need_mask = splits * steps * tile_rows_eff != rows

            kernel = functools.partial(
                _wmse_tiled_kernel, epsilon=epsilon, fg_weight=fg_weight,
                tile_rows=tile_rows_eff, steps=steps, valid_rows=rows,
                need_mask=need_mask)

            last_block = total_blocks - 1

            def in_map(c, i):
                # Clamp so overrun grid points re-read the (already resident)
                # last block; the kernel masks their contribution to zero.
                return (jnp.minimum(c * steps + i, last_block), 0)

            in_spec = pl.BlockSpec((tile_rows_eff, LANES), in_map)

            # 2 inputs x 2 pipeline buffers x tile + small acc/out, with
            # headroom; capped well under v7x's 64 MiB per-TC physical VMEM.
            tile_bytes = tile_rows_eff * LANES * x2d.dtype.itemsize
            vmem_bytes = min(32 * 1024 * 1024,
                             max(16 * 1024 * 1024, 4 * tile_bytes + (2 << 20)))

            out = pl.pallas_call(
                kernel,
                out_shape=jax.ShapeDtypeStruct((splits, SUBLANES, LANES),
                                               jnp.float32),
                grid_spec=pltpu.PrefetchScalarGridSpec(
                    num_scalar_prefetch=0,
                    grid=(splits, steps),
                    in_specs=[in_spec, in_spec],
                    out_specs=pl.BlockSpec((1, SUBLANES, LANES),
                                           lambda c, i: (c, 0, 0)),
                    scratch_shapes=[pltpu.VMEM((SUBLANES, LANES), jnp.float32)],
                ),
                compiler_params=pltpu.CompilerParams(
                    # v7x: shard independent core splits across both TCs;
                    # no effect on single-TC v5e/v6e. Reduction axis arbitrary.
                    dimension_semantics=("parallel", "arbitrary"),
                    vmem_limit_bytes=vmem_bytes,
                ),
            )(x2d, t2d)
            # Combine the per-core partial sums (<= num_core_splits scalars).
            total = total + jnp.sum(out[:, 0, 0])

    return total * (1.0 / n)


def _reference(inp, target, epsilon=1e-3, foreground_weight=10.0):
    w1 = jnp.where(target > epsilon, foreground_weight, 1.0)
    w2 = jnp.where(inp > epsilon, foreground_weight, 1.0)
    return jnp.mean(w1 * w2 * (inp - target) ** 2)


if __name__ == "__main__":
    key = jax.random.PRNGKey(0)
    k1, k2, k3, k4, k5, k6 = jax.random.split(key, 6)

    # Small NCHW case matching the PyTorch module's typical inputs.
    B, C, H, W = 2, 4, 16, 16
    inp = jax.random.uniform(k1, (B, C, H, W), dtype=jnp.float32) - 0.3
    target = jax.random.uniform(k2, (B, C, H, W), dtype=jnp.float32) - 0.3
    loss = jax.block_until_ready(weighted_mse_loss(inp, target))
    ref = _reference(inp, target)
    assert jnp.allclose(loss, ref, rtol=1e-4, atol=1e-6), (loss, ref)

    # Non-multiple-of-128 element count: exercises the no-pad tail path.
    inp_t = jax.random.uniform(k5, (2, 4, 15, 15), dtype=jnp.float32) - 0.3
    target_t = jax.random.uniform(k6, (2, 4, 15, 15), dtype=jnp.float32) - 0.3
    loss_t = jax.block_until_ready(weighted_mse_loss(inp_t, target_t))
    ref_t = _reference(inp_t, target_t)
    assert jnp.allclose(loss_t, ref_t, rtol=1e-4, atol=1e-6), (loss_t, ref_t)

    # Larger case exercising the tiled path (default big tiles, single block).
    inp2 = jax.random.uniform(k3, (2, 4, 100, 512), dtype=jnp.float32) - 0.3
    target2 = jax.random.uniform(k4, (2, 4, 100, 512), dtype=jnp.float32) - 0.3
    loss2 = jax.block_until_ready(weighted_mse_loss(inp2, target2))
    ref2 = _reference(inp2, target2)
    assert jnp.allclose(loss2, ref2, rtol=1e-4, atol=1e-6), (loss2, ref2)

    # Same data with small tiles: exercises the core-split grid with an odd
    # block count (clamped index_map + overrun/partial-block masking).
    loss3 = jax.block_until_ready(
        weighted_mse_loss(inp2, target2, tile_rows=512))
    assert jnp.allclose(loss3, ref2, rtol=1e-4, atol=1e-6), (loss3, ref2)

    print("KERNEL_OK")
</pallas_src>

<mosaic_0001>
module attributes {stable_mosaic.version = 11 : i64} {
  func.func @_wmse_single_kernel(%arg0: memref<16x128xf32, #tpu.memory_space<vmem>>, %arg1: memref<16x128xf32, #tpu.memory_space<vmem>>, %arg2: memref<1x128xf32, #tpu.memory_space<vmem>>) attributes {dimension_semantics = [], scalar_prefetch = 0 : i64, scratch_operands = 0 : i64, tpu.core_type = #tpu.core_type<tc>} {
    %c0 = arith.constant 0 : index
    %c0_0 = arith.constant 0 : index
    %0 = vector.load %arg0[%c0, %c0_0] : memref<16x128xf32, #tpu.memory_space<vmem>>, vector<16x128xf32>
    %c0_1 = arith.constant 0 : index
    %c0_2 = arith.constant 0 : index
    %1 = vector.load %arg1[%c0_1, %c0_2] : memref<16x128xf32, #tpu.memory_space<vmem>>, vector<16x128xf32>
    %cst = arith.constant 1.000000e-03 : f32
    %2 = vector.broadcast %cst : f32 to vector<16x128xf32>
    %3 = arith.cmpf ogt, %1, %2 : vector<16x128xf32>
    %cst_3 = arith.constant 1.000000e+01 : f32
    %cst_4 = arith.constant 1.000000e+00 : f32
    %4 = vector.broadcast %cst_3 : f32 to vector<16x128xf32>
    %5 = vector.broadcast %cst_4 : f32 to vector<16x128xf32>
    %6 = arith.select %3, %4, %5 : vector<16x128xi1>, vector<16x128xf32>
    %cst_5 = arith.constant 1.000000e-03 : f32
    %7 = vector.broadcast %cst_5 : f32 to vector<16x128xf32>
    %8 = arith.cmpf ogt, %0, %7 : vector<16x128xf32>
    %cst_6 = arith.constant 1.000000e+01 : f32
    %cst_7 = arith.constant 1.000000e+00 : f32
    %9 = vector.broadcast %cst_6 : f32 to vector<16x128xf32>
    %10 = vector.broadcast %cst_7 : f32 to vector<16x128xf32>
    %11 = arith.select %8, %9, %10 : vector<16x128xi1>, vector<16x128xf32>
    %12 = arith.subf %0, %1 : vector<16x128xf32>
    %13 = arith.mulf %6, %11 : vector<16x128xf32>
    %14 = arith.mulf %13, %12 : vector<16x128xf32>
    %15 = arith.mulf %14, %12 : vector<16x128xf32>
    %16 = vector.shape_cast %15 : vector<16x128xf32> to vector<1x16x128xf32>
    %cst_8 = arith.constant dense<0.000000e+00> : vector<1xf32>
    %17 = vector.multi_reduction <add>, %16, %cst_8 [1, 2] : vector<1x16x128xf32> to vector<1xf32>
    %18 = vector.shape_cast %17 : vector<1xf32> to vector<1x1x1xf32>
    %19 = vector.extract %18[0, 0, 0] : f32 from vector<1x1x1xf32>
    %20 = vector.broadcast %19 : f32 to vector<1x128xf32>
    %c0_9 = arith.constant 0 : index
    %c0_10 = arith.constant 0 : index
    %21 = vector.load %arg2[%c0_9, %c0_10] : memref<1x128xf32, #tpu.memory_space<vmem>>, vector<1x128xf32>
    tpu.vector_store %arg2[%c0_9, %c0_10], %20 {strides = array<i32>} : memref<1x128xf32, #tpu.memory_space<vmem>>, vector<1x128xf32>,
    return
  }
}

</mosaic_0001>

<llo_original>
// kernel: tpu_custom_call.1
$region0: #{tpu_custom_call.1}
  #allocation0 [shape = 'u32[]', space=smem, size = 0x4, offset = 0x4, fixed_abs, tag = 'smem constant byte address 0x4 - core index']
  #allocation1 [shape = 'u32[144,128]{1,0:T(1,128)}', space=vmem, size = 0x12000, scoped, tag = 'internal scratch']
  %s0 = inlined_call_operand.hbm [shape: f32[16,128], index: 0, kind: input, shape index: {}]
  %s1 = inlined_call_operand.hbm [shape: f32[16,128], index: 1, kind: input, shape index: {}]
  %s2 = inlined_call_operand.hbm [shape: f32[1,128], index: 2, kind: output, shape index: {}]
  %s3 = sld [smem:[#allocation0]]
  $region26: #{tpu_custom_call.1} parent=0
    _
  %s5 = ssub.s32 1, %s3
  %s6 = scalar_select 0, %s5, %s3
  $region1: #{tpu_custom_call.1} parent=0
    #allocation2 [shape = 'u8[8192]{0}', space=vmem, size = 0x2000, scoped, tag = 'input window, operand 0, single buffered']
    #allocation3 [shape = 's32[1]{0}', space=sflag, size = 0x4, scoped, tag = 'scoped memory for tpu_custom_call.1']
    #allocation4 [shape = 's32[1]{0}', space=sflag, size = 0x4, scoped, tag = 'scoped memory for tpu_custom_call.1']
    #allocation5 [shape = 'u8[8192]{0}', space=vmem, size = 0x2000, scoped, tag = 'input window, operand 1, single buffered']
    #allocation6 [shape = 's32[1]{0}', space=sflag, size = 0x4, scoped, tag = 'scoped memory for tpu_custom_call.1']
    #allocation7 [shape = 'u8[512]{0}', space=vmem, size = 0x400, scoped, tag = 'output window, operand 0, single buffered']
    %7 = vsyncpa [#allocation3], 0
    %8 = vsyncpa [#allocation6], 0
    %9 = vsyncpa [#allocation4], 0
    // Predicated region
    $region2: #{tpu_custom_call.1} parent=1 // pred_check
      _
    $region3: #{tpu_custom_call.1} parent=1 // pred_check_branch
      %11 = sbr.rel (0) target = $region5
    $region4: #{tpu_custom_call.1} parent=1 // pred_region
      %s13 = ssub.s32 256, 256
      %14 = vsyncadd [#allocation3], %s13
      %s15 = sshll.u32 [#allocation2], 4
      %s16 = int_to_ptr.vmem [resolvable:$true] %s15
      %21 = dma.hbm_to_vmem [thread:$0]  %s0, 256, %s16, [#allocation3], 128, 128, 8
    $region5: #{tpu_custom_call.1} parent=1 // pred_fallthru
      _
    // Predicated region
    $region6: #{tpu_custom_call.1} parent=1 // pred_check
      _
    $region7: #{tpu_custom_call.1} parent=1 // pred_check_branch
      %23 = sbr.rel (0) target = $region9
    $region8: #{tpu_custom_call.1} parent=1 // pred_region
      %s25 = ssub.s32 256, 256
      %26 = vsyncadd [#allocation6], %s25
      %s27 = sshll.u32 [#allocation5], 4
      %s28 = int_to_ptr.vmem [resolvable:$true] %s27
      %33 = dma.hbm_to_vmem [thread:$0]  %s1, 256, %s28, [#allocation6], 128, 128, 8
    $region9: #{tpu_custom_call.1} parent=1 // pred_fallthru
      _
    // Predicated region
    $region10: #{tpu_custom_call.1} parent=1 // pred_check
      _
    $region11: #{tpu_custom_call.1} parent=1 // pred_check_branch
      %35 = sbr.rel (0) target = $region13
    $region12: #{tpu_custom_call.1} parent=1 // pred_region
      %36 = dma.done [#allocation3], 256
    $region13: #{tpu_custom_call.1} parent=1 // pred_fallthru
      _
    // Predicated region
    $region14: #{tpu_custom_call.1} parent=1 // pred_check
      _
    $region15: #{tpu_custom_call.1} parent=1 // pred_check_branch
      %38 = sbr.rel (0) target = $region17
    $region16: #{tpu_custom_call.1} parent=1 // pred_region
      %39 = dma.done [#allocation6], 256
    $region17: #{tpu_custom_call.1} parent=1 // pred_fallthru
      _
    %v40 = vld [vmem:[#allocation2] sm:$0xff]
    %v41 = vld [vmem:[#allocation2 + $0x8] sm:$0xff]
    %v42 = vld [vmem:[#allocation5] sm:$0xff]
    %v43 = vld [vmem:[#allocation5 + $0x8] sm:$0xff]
    %vm44 = vcmp.gt.f32.partialorder %v42, 0.001
    %vm45 = vcmp.gt.f32.partialorder %v43, 0.001
    %v46 = vsel %vm44, 10.0, 1.0
    %v47 = vsel %vm45, 10.0, 1.0
    %vm48 = vcmp.gt.f32.partialorder %v40, 0.001
    %vm49 = vcmp.gt.f32.partialorder %v41, 0.001
    %v50 = vsel %vm48, 10.0, 1.0
    %v51 = vsel %vm49, 10.0, 1.0
    %v52 = vsub.f32 %v40, %v42
    %v53 = vsub.f32 %v41, %v43
    %v54 = vmul.f32 %v46, %v50
    %v55 = vmul.f32 %v47, %v51
    %v56 = vmul.f32 %v54, %v52
    %v57 = vmul.f32 %v55, %v53
    %v58 = vmul.f32 %v56, %v52
    %v59 = vmul.f32 %v57, %v53
    %v60 = vadd.f32 %v58, %v59
    %61 = vadd.xlane.f32.xlu0 %v60
    %v62 = vpop.xlane.xlu0 %61
    %v63 = vrot.slane %v62, 4
    %v64 = vadd.f32 %v62, %v63
    %v65 = vrot.slane %v64, 2
    %v66 = vadd.f32 %v64, %v65
    %v67 = vrot.slane %v66, 1
    %v68 = vadd.f32 %v66, %v67
    %s69 = vtos %v68
    %v70 = vstv %s69
    %71 = vst [vmem:[#allocation7] sm:$0x1] %v70
    // Predicated region
    $region18: #{tpu_custom_call.1} parent=1 // pred_check
      _
    $region19: #{tpu_custom_call.1} parent=1 // pred_check_branch
      %73 = sbr.rel (0) target = $region21
    $region20: #{tpu_custom_call.1} parent=1 // pred_region
      %s75 = ssub.s32 16, 16
      %76 = vsyncadd [#allocation4], %s75
      %s78 = sshll.u32 [#allocation7], 4
      %s79 = int_to_ptr.vmem [resolvable:$true] %s78
      %81 = dma.vmem_to_hbm [thread:$0]  %s79, 16, %s2, [#allocation4]
    $region21: #{tpu_custom_call.1} parent=1 // pred_fallthru
      _
    // Predicated region
    $region22: #{tpu_custom_call.1} parent=1 // pred_check
      _
    $region23: #{tpu_custom_call.1} parent=1 // pred_check_branch
      %83 = sbr.rel (0) target = $region25
    $region24: #{tpu_custom_call.1} parent=1 // pred_region
      %84 = dma.done [#allocation4], 16
    $region25: #{tpu_custom_call.1} parent=1 // pred_fallthru
      _
    %85 = vsyncpa [#allocation3], 1
    %86 = vsyncpa [#allocation6], 1
    %87 = vsyncpa [#allocation4], 1

</llo_original>
